<compile_context>
chip_gen: v7x
topology: tpu7x:2x2x1
jax: 0.10.0
libtpu: 0.0.40
codegen_flags: <defaults>
</compile_context>

<pallas_src>
import numpy as np
import jax
import jax.numpy as jnp
from jax import lax
from jax.experimental import pallas as pl
from jax.experimental.pallas import tpu as pltpu


def _round_up(x: int, m: int) -> int:
    return ((x + m - 1) // m) * m


def _pick_tile(total: int, want: int) -> int:
    """Largest multiple-of-8 divisor of `total` that is <= want (falls back to total)."""
    want = min(want, total)
    for t in range(want - want % 8, 0, -8):
        if total % t == 0:
            return t
    return total


# -----------------------------------------------------------------------------
# Fused Pallas kernel: conv-as-matmul (bias folded, ReLU) -> adaptive-pool matmul,
# reduced over spatial tiles of the conv output.
# -----------------------------------------------------------------------------
def fused_conv_pool_kernel(p_ref, w_ref, pm_ref, o_ref):
    """Grid = (batch b, spatial tile k). Per step:
         feats_k  = relu( patches_k (tile_m, Kp) @ W (Kp, Cp) )   # bias folded into W
         out     += pm_k (S2, tile_m) @ feats_k (tile_m, Cp)      # AdaptiveAvgPool2d
    The f32 output block is resident across k (index_map ignores k) and acts as the
    pooled accumulator, so only a tile_m-sized feature-map slice is ever on-chip."""
    k = pl.program_id(1)

    @pl.when(k == 0)
    def _init():
        o_ref[...] = jnp.zeros_like(o_ref)

    feats = jnp.dot(p_ref[0], w_ref[...], preferred_element_type=jnp.float32)
    feats = jnp.maximum(feats, 0.0).astype(jnp.bfloat16)      # bf16 back onto the MXU
    o_ref[0] += jnp.dot(pm_ref[0], feats, preferred_element_type=jnp.float32)


# -----------------------------------------------------------------------------
# Glue
# -----------------------------------------------------------------------------
def _pool_1d(in_size: int, out_size: int) -> np.ndarray:
    """1-D adaptive-average-pool matrix matching torch.nn.AdaptiveAvgPool semantics."""
    m = np.zeros((out_size, in_size), np.float32)
    for i in range(out_size):
        start = (i * in_size) // out_size
        end = -(-((i + 1) * in_size) // out_size)  # ceil
        m[i, start:end] = 1.0 / (end - start)
    return m


def encoder_forward(images_nchw, conv_w, conv_b, enc_image_size, *, tile_m=32,
                    vmem_limit_bytes=32 * 1024 * 1024):
    """
    images_nchw : (B, 3, H, W)  -- PyTorch convention
    conv_w      : (3, 3, Cin, Cout) synthetic backbone stem weights (HWIO)
    conv_b      : (Cout,)
    returns     : (B, enc_image_size, enc_image_size, Cout)  (== out.permute(0,2,3,1))

    tile_m: rows of the conv output processed per grid step. Small here for the toy
    shapes; at real backbone sizes pick ~512-1024 for v5e/v6e and roughly half that
    for v7x (64 MiB VMEM/TC), then raise vmem_limit_bytes accordingly.
    """
    x = jnp.transpose(images_nchw, (0, 2, 3, 1)).astype(jnp.float32)   # NCHW -> NHWC
    B, H, W, Cin = x.shape
    stride = 2
    Hout, Wout = H // stride, W // stride
    Cout = conv_w.shape[-1]
    Mb = Hout * Wout
    S = enc_image_size
    S2 = S * S

    tile_m = _pick_tile(Mb, tile_m)
    num_k = Mb // tile_m

    # ---- im2col for the 3x3 / stride-2 / pad-1 stem (pure data movement in XLA) ----
    xp = jnp.pad(x, ((0, 0), (1, 1), (1, 1), (0, 0)))
    cols = []
    for kh in range(3):
        for kw in range(3):
            cols.append(xp[:, kh:kh + stride * Hout:stride,
                           kw:kw + stride * Wout:stride, :])
    patches = jnp.concatenate(cols, axis=-1).reshape(B, Mb, 9 * Cin)

    # ---- fold bias into the contraction (ones column); pad K to a sublane multiple ----
    K0 = 9 * Cin + 1
    Kp = _round_up(K0, 8)
    patches = jnp.concatenate([patches, jnp.ones((B, Mb, 1), jnp.float32)], axis=-1)
    patches = jnp.pad(patches, ((0, 0), (0, 0), (0, Kp - K0))).astype(jnp.bfloat16)

    # ---- weights: (kh, kw, cin) row order matches im2col; bias row; lane-pad Cout ----
    Cp = Cout if Cout % 128 == 0 else _round_up(Cout, 128)   # skip pad at real Cout
    w2d = conv_w.reshape(9 * Cin, Cout).astype(jnp.float32)
    w2d = jnp.concatenate([w2d, conv_b.reshape(1, Cout).astype(jnp.float32)], axis=0)
    w2d = jnp.pad(w2d, ((0, Kp - K0), (0, Cp - Cout))).astype(jnp.bfloat16)   # (Kp, Cp)

    # ---- AdaptiveAvgPool2d((S, S)) as a pooling matrix, pre-split into k tiles ----
    pm = np.kron(_pool_1d(Hout, S), _pool_1d(Wout, S))                 # (S2, Mb)
    pm = pm.reshape(S2, num_k, tile_m).transpose(1, 0, 2)              # (num_k, S2, tile_m)
    pm = jnp.asarray(pm, dtype=jnp.bfloat16)

    flops = 2 * B * Mb * Kp * Cp + 2 * B * S2 * Mb * Cp
    bytes_accessed = 2 * (B * Mb * Kp + Kp * Cp + B * S2 * Mb) + 4 * B * S2 * Cp

    pooled = pl.pallas_call(
        fused_conv_pool_kernel,
        out_shape=jax.ShapeDtypeStruct((B, S2, Cp), jnp.float32),
        grid_spec=pltpu.PrefetchScalarGridSpec(
            num_scalar_prefetch=0,
            grid=(B, num_k),                  # batch parallel; spatial-tile reduction last
            in_specs=[
                pl.BlockSpec((1, tile_m, Kp), lambda b, k: (b, k, 0)),   # streamed patches
                pl.BlockSpec((Kp, Cp), lambda b, k: (0, 0)),             # resident weights
                pl.BlockSpec((1, S2, tile_m), lambda b, k: (k, 0, 0)),   # streamed pool tile
            ],
            out_specs=pl.BlockSpec((1, S2, Cp), lambda b, k: (b, 0, 0)), # resident accumulator
        ),
        compiler_params=pltpu.CompilerParams(
            dimension_semantics=("parallel", "arbitrary"),
            vmem_limit_bytes=vmem_limit_bytes),
        cost_estimate=pl.CostEstimate(flops=flops, transcendentals=0,
                                      bytes_accessed=bytes_accessed),
    )(patches, w2d, pm)

    if Cp != Cout:
        pooled = pooled[:, :, :Cout]          # only needed when Cout is not a lane multiple
    # NHWC output == PyTorch `out.permute(0, 2, 3, 1)`.
    return pooled.reshape(B, S, S, Cout)


# -----------------------------------------------------------------------------
# Driver
# -----------------------------------------------------------------------------
if __name__ == "__main__":
    ENC_IMAGE_SIZE = 4     # small stand-in for the default 14
    ENCODER_DIM = 32       # small stand-in for the backbone feature dim

    key = jax.random.PRNGKey(0)
    k_img, k_w, k_b = jax.random.split(key, 3)

    images = jax.random.normal(k_img, (2, 3, 16, 16), dtype=jnp.float32)   # NCHW
    conv_w = 0.1 * jax.random.normal(k_w, (3, 3, 3, ENCODER_DIM), dtype=jnp.float32)
    conv_b = 0.01 * jax.random.normal(k_b, (ENCODER_DIM,), dtype=jnp.float32)

    out = encoder_forward(images, conv_w, conv_b, ENC_IMAGE_SIZE)
    out = jax.block_until_ready(out)

    assert out.shape == (2, ENC_IMAGE_SIZE, ENC_IMAGE_SIZE, ENCODER_DIM), out.shape
    assert out.dtype == jnp.float32

    # Pure-JAX reference: lax conv + exact 2x2 block-average pool (Hout=8 -> S=4).
    x_nhwc = jnp.transpose(images, (0, 2, 3, 1))
    ref = lax.conv_general_dilated(
        x_nhwc, conv_w, window_strides=(2, 2), padding=((1, 1), (1, 1)),
        dimension_numbers=("NHWC", "HWIO", "NHWC"),
        precision=lax.Precision.HIGHEST) + conv_b
    ref = jnp.maximum(ref, 0.0)
    Br, Hr, Wr, Cr = ref.shape
    ref = ref.reshape(Br, ENC_IMAGE_SIZE, Hr // ENC_IMAGE_SIZE,
                      ENC_IMAGE_SIZE, Wr // ENC_IMAGE_SIZE, Cr).mean(axis=(2, 4))
    # bf16 operands / f32 accumulation vs a HIGHEST-precision f32 reference.
    assert bool(jnp.allclose(out, ref, rtol=2e-2, atol=2e-2))

    print("KERNEL_OK")
</pallas_src>

<mosaic_0001>
module attributes {stable_mosaic.version = 11 : i64} {
  func.func @fused_conv_pool_kernel(%arg0: i32, %arg1: i32, %arg2: memref<1x32x32xbf16, #tpu.memory_space<vmem>>, %arg3: memref<32x128xbf16, #tpu.memory_space<vmem>>, %arg4: memref<1x16x32xbf16, #tpu.memory_space<vmem>>, %arg5: memref<1x16x128xf32, #tpu.memory_space<vmem>>) attributes {dimension_semantics = [#tpu.dimension_semantics<parallel>, #tpu.dimension_semantics<arbitrary>], iteration_bounds = array<i64: 2, 2>, scalar_prefetch = 0 : i64, scratch_operands = 0 : i64, tpu.core_type = #tpu.core_type<tc>, window_params = [{transform_indices = @transform_0, window_bounds = array<i64: 1, 32, 32>}, {pipeline_mode = #tpu.pipeline_mode<synchronous>, transform_indices = @transform_1, window_bounds = array<i64: 32, 128>}, {transform_indices = @transform_2, window_bounds = array<i64: 1, 16, 32>}, {transform_indices = @transform_3, window_bounds = array<i64: 1, 16, 128>}]} {
    %c0_i32 = arith.constant 0 : i32
    %0 = arith.cmpi eq, %arg1, %c0_i32 : i32
    %1 = arith.extui %0 : i1 to i32
    %c0_i32_0 = arith.constant 0 : i32
    %2 = arith.cmpi ne, %1, %c0_i32_0 : i32
    scf.if %2 {
      %cst_16 = arith.constant 0.000000e+00 : f32
      %19 = vector.broadcast %cst_16 : f32 to vector<1x16x128xf32>
      %c0_17 = arith.constant 0 : index
      %c0_18 = arith.constant 0 : index
      %c0_19 = arith.constant 0 : index
      %20 = vector.load %arg5[%c0_17, %c0_18, %c0_19] : memref<1x16x128xf32, #tpu.memory_space<vmem>>, vector<1x16x128xf32>
      tpu.vector_store %arg5[%c0_17, %c0_18, %c0_19], %19 {strides = array<i32>} : memref<1x16x128xf32, #tpu.memory_space<vmem>>, vector<1x16x128xf32>,
    } else {
    }
    %c0 = arith.constant 0 : index
    %c0_1 = arith.constant 0 : index
    %c0_2 = arith.constant 0 : index
    %3 = vector.load %arg2[%c0, %c0_1, %c0_2] : memref<1x32x32xbf16, #tpu.memory_space<vmem>>, vector<1x32x32xbf16>
    %4 = vector.shape_cast %3 : vector<1x32x32xbf16> to vector<32x32xbf16>
    %c0_3 = arith.constant 0 : index
    %c0_4 = arith.constant 0 : index
    %5 = vector.load %arg3[%c0_3, %c0_4] : memref<32x128xbf16, #tpu.memory_space<vmem>>, vector<32x128xbf16>
    %cst = arith.constant dense<0.000000e+00> : vector<32x128xf32>
    %6 = tpu.matmul %4, %5, %cst {dimension_numbers = #tpu.dot_dimension_numbers<[1], [0], [0], [1], [0, 0, 1, 1], [], []>} : vector<32x32xbf16>, vector<32x128xbf16>, vector<32x128xf32> -> vector<32x128xf32>
    %cst_5 = arith.constant 0.000000e+00 : f32
    %7 = vector.broadcast %cst_5 : f32 to vector<32x128xf32>
    %8 = arith.maximumf %6, %7 : vector<32x128xf32>
    %9 = arith.truncf %8 : vector<32x128xf32> to vector<32x128xbf16>
    %c0_6 = arith.constant 0 : index
    %c0_7 = arith.constant 0 : index
    %c0_8 = arith.constant 0 : index
    %10 = vector.load %arg5[%c0_6, %c0_7, %c0_8] : memref<1x16x128xf32, #tpu.memory_space<vmem>>, vector<1x16x128xf32>
    %11 = vector.shape_cast %10 : vector<1x16x128xf32> to vector<16x128xf32>
    %c0_9 = arith.constant 0 : index
    %c0_10 = arith.constant 0 : index
    %c0_11 = arith.constant 0 : index
    %12 = vector.load %arg4[%c0_9, %c0_10, %c0_11] : memref<1x16x32xbf16, #tpu.memory_space<vmem>>, vector<1x16x32xbf16>
    %13 = vector.shape_cast %12 : vector<1x16x32xbf16> to vector<16x32xbf16>
    %cst_12 = arith.constant dense<0.000000e+00> : vector<16x128xf32>
    %14 = tpu.matmul %13, %9, %cst_12 {dimension_numbers = #tpu.dot_dimension_numbers<[1], [0], [0], [1], [0, 0, 1, 1], [], []>} : vector<16x32xbf16>, vector<32x128xbf16>, vector<16x128xf32> -> vector<16x128xf32>
    %15 = arith.addf %11, %14 : vector<16x128xf32>
    %c0_13 = arith.constant 0 : index
    %c0_14 = arith.constant 0 : index
    %c0_15 = arith.constant 0 : index
    %16 = vector.load %arg5[%c0_13, %c0_14, %c0_15] : memref<1x16x128xf32, #tpu.memory_space<vmem>>, vector<1x16x128xf32>
    %17 = vector.shape_cast %16 : vector<1x16x128xf32> to vector<16x128xf32>
    %18 = vector.shape_cast %15 : vector<16x128xf32> to vector<1x16x128xf32>
    tpu.vector_store %arg5[%c0_13, %c0_14, %c0_15], %18 {strides = array<i32>} : memref<1x16x128xf32, #tpu.memory_space<vmem>>, vector<1x16x128xf32>,
    return
  }
  func.func @transform_0(%arg0: i32, %arg1: i32) -> (i32, i32, i32) {
    %c0_i32 = arith.constant 0 : i32
    %c0_i32_0 = arith.constant 0 : i32
    return %arg0, %arg1, %c0_i32 : i32, i32, i32
  }
  func.func @transform_1(%arg0: i32, %arg1: i32) -> (i32, i32) {
    %c0_i32 = arith.constant 0 : i32
    %c0_i32_0 = arith.constant 0 : i32
    %c0_i32_1 = arith.constant 0 : i32
    return %c0_i32, %c0_i32_0 : i32, i32
  }
  func.func @transform_2(%arg0: i32, %arg1: i32) -> (i32, i32, i32) {
    %c0_i32 = arith.constant 0 : i32
    %c0_i32_0 = arith.constant 0 : i32
    %c0_i32_1 = arith.constant 0 : i32
    return %arg1, %c0_i32, %c0_i32_0 : i32, i32, i32
  }
  func.func @transform_3(%arg0: i32, %arg1: i32) -> (i32, i32, i32) {
    %c0_i32 = arith.constant 0 : i32
    %c0_i32_0 = arith.constant 0 : i32
    %c0_i32_1 = arith.constant 0 : i32
    return %arg0, %c0_i32, %c0_i32_0 : i32, i32, i32
  }
}

</mosaic_0001>

<llo_original>
// kernel: tpu_custom_call.1
$region0: #{tpu_custom_call.1}
  #allocation0 [shape = 'u32[]', space=smem, size = 0x4, offset = 0x4, fixed_abs, tag = 'smem constant byte address 0x4 - core index']
  #allocation1 [shape = 'u32[144,128]{1,0:T(1,128)}', space=vmem, size = 0x12000, scoped, tag = 'internal scratch']
  %s0 = inlined_call_operand.vmem [shape: bf16[2,64,32], index: 0, kind: input, shape index: {}]
  %s1 = inlined_call_operand.vmem [shape: bf16[32,128], index: 1, kind: input, shape index: {}]
  %s2 = inlined_call_operand.vmem [shape: bf16[2,16,32], index: 2, kind: input, shape index: {}]
  %s3 = inlined_call_operand.hbm [shape: f32[2,16,128], index: 3, kind: output, shape index: {}]
  %s4 = sld [smem:[#allocation0]]
  $region49: #{tpu_custom_call.1} parent=0
    _
  %s6 = ssub.s32 1, %s4
  %s7 = scalar_select 0, %s6, %s4
  $region1: #{tpu_custom_call.1} parent=0
    #allocation2 [shape = 'u8[16384]{0}', space=vmem, size = 0x4000, scoped, tag = 'output window, operand 0']
    #allocation3 [shape = 's32[2]{0}', space=sflag, size = 0x8, scoped, tag = 'scoped memory for tpu_custom_call.1']
    %8 = vsyncpa [#allocation3], 0
    %s9 = scalar_lea.sflag [#allocation3], 1
    %10 = vsyncpa %s9, 0
    loop: start=0, step=1, limit=6
    $region2: #{tpu_custom_call.1} parent=1 // loop_pre_header
      _
    $region3: #{tpu_custom_call.1} parent=1 // loop_header
      %s12 = sphi 0, %s16
      %p13 = scmp.ge.s32.totalorder %s12, 6
      %s19 = sphi 0, %s31
      %s20 = sphi 0, %s27
      %s21 = sphi 0, %s19
      %s22 = sphi 0, %s20
      %s23 = sphi 0, %s21
      %s24 = sphi 0, %s22
      %s36 = sphi 0, %s38
      %s39 = sphi 0, %s36
      %s40 = sphi 0, %s39
      %s56 = sphi 0, %s40
      %s60 = sphi 0, %s60
      %s62 = sphi 0, %s60
      %s63 = sphi 0, %s62
      %s77 = sphi 0, %s63
      %s83 = sphi 0, %s85
      %s86 = sphi 0, %s83
      %s87 = sphi 0, %s86
      %s103 = sphi 0, %s87
      %s109 = sphi 0, %s111
      %s112 = sphi 0, %s109
      %s113 = sphi 0, %s112
      %s129 = sphi 0, %s113
    $region4: #{tpu_custom_call.1} parent=1 // loop_header_branch
      %15 = sbr.rel (%p13) target = $region8
    $region5: #{tpu_custom_call.1} parent=1 // loop_body
      %s17 = ssub.s32 %s12, 1
      %s18 = ssub.s32 %s12, 2
      %s25 = sadd.s32 1, %s20
      %p26 = scmp.ge.s32.totalorder %s25, 2
      %s27 = scalar_select %p26, 0, %s25
      %s28 = sadd.s32 1, %s19
      %s29 = scalar_select %p26, %s28, %s19
      %p30 = scmp.ge.s32.totalorder %s29, 2
      %s31 = scalar_select %p30, 0, %s29
      %s32 = ssub.s32 %s19, %s31
      %s33 = ssub.s32 %s20, %s27
      %s34 = sor.u32 %s32, %s33
      %p35 = scmp.eq.s32.totalorder %s34, 0
      %s37 = sadd.s32 %s36, 1
      %s38 = scalar_select %p35, %s36, %s37
      %p41 = pneg %p35
      %p42 = scmp.eq.s32.totalorder %s12, 3
      %p43 = por %p41, %p42
      %p44 = scmp.ne.s32.totalorder %s36, %s39
      %p45 = scmp.eq.s32.totalorder %s12, 0
      %p46 = por %p44, %p45
      %p47 = scmp.ne.s32.totalorder %s36, %s39
      %p48 = scmp.eq.s32.totalorder %s17, 3
      %p49 = por %p47, %p48
      %p50 = scmp.ne.s32.totalorder %s39, %s40
      %p51 = scmp.eq.s32.totalorder %s17, 0
      %p52 = por %p50, %p51
      %p53 = scmp.ne.s32.totalorder %s39, %s40
      %p54 = scmp.eq.s32.totalorder %s18, 3
      %p55 = por %p53, %p54
      %p57 = scmp.ne.s32.totalorder %s40, %s56
      %p58 = scmp.eq.s32.totalorder %s18, 0
      %p59 = por %p57, %p58
      %s61 = sadd.s32 %s60, 1
      %p64 = scmp.eq.s32.totalorder %s12, 3
      %p65 = scmp.ne.s32.totalorder %s60, %s62
      %p66 = scmp.eq.s32.totalorder %s12, 0
      %p67 = por %p65, %p66
      %p68 = scmp.ne.s32.totalorder %s60, %s62
      %p69 = scmp.eq.s32.totalorder %s17, 3
      %p70 = por %p68, %p69
      %p71 = scmp.ne.s32.totalorder %s62, %s63
      %p72 = scmp.eq.s32.totalorder %s17, 0
      %p73 = por %p71, %p72
      %p74 = scmp.ne.s32.totalorder %s62, %s63
      %p75 = scmp.eq.s32.totalorder %s18, 3
      %p76 = por %p74, %p75
      %p78 = scmp.ne.s32.totalorder %s63, %s77
      %p79 = scmp.eq.s32.totalorder %s18, 0
      %p80 = por %p78, %p79
      %s81 = ssub.s32 %s20, %s27
      %p82 = scmp.eq.s32.totalorder %s81, 0
      %s84 = sadd.s32 %s83, 1
      %s85 = scalar_select %p82, %s83, %s84
      %p88 = pneg %p82
      %p89 = scmp.eq.s32.totalorder %s12, 3
      %p90 = por %p88, %p89
      %p91 = scmp.ne.s32.totalorder %s83, %s86
      %p92 = scmp.eq.s32.totalorder %s12, 0
      %p93 = por %p91, %p92
      %p94 = scmp.ne.s32.totalorder %s83, %s86
      %p95 = scmp.eq.s32.totalorder %s17, 3
      %p96 = por %p94, %p95
      %p97 = scmp.ne.s32.totalorder %s86, %s87
      %p98 = scmp.eq.s32.totalorder %s17, 0
      %p99 = por %p97, %p98
      %p100 = scmp.ne.s32.totalorder %s86, %s87
      %p101 = scmp.eq.s32.totalorder %s18, 3
      %p102 = por %p100, %p101
      %p104 = scmp.ne.s32.totalorder %s87, %s103
      %p105 = scmp.eq.s32.totalorder %s18, 0
      %p106 = por %p104, %p105
      %s107 = ssub.s32 %s19, %s31
      %p108 = scmp.eq.s32.totalorder %s107, 0
      %s110 = sadd.s32 %s109, 1
      %s111 = scalar_select %p108, %s109, %s110
      %p114 = pneg %p108
      %p115 = scmp.eq.s32.totalorder %s12, 3
      %p116 = por %p114, %p115
      %p117 = scmp.ne.s32.totalorder %s109, %s112
      %p118 = scmp.eq.s32.totalorder %s12, 0
      %p119 = por %p117, %p118
      %p120 = scmp.ne.s32.totalorder %s109, %s112
      %p121 = scmp.eq.s32.totalorder %s17, 3
      %p122 = por %p120, %p121
      %p123 = scmp.ne.s32.totalorder %s112, %s113
      %p124 = scmp.eq.s32.totalorder %s17, 0
      %p125 = por %p123, %p124
      %p126 = scmp.ne.s32.totalorder %s112, %s113
      %p127 = scmp.eq.s32.totalorder %s18, 3
      %p128 = por %p126, %p127
      %p130 = scmp.ne.s32.totalorder %s113, %s129
      %p131 = scmp.eq.s32.totalorder %s18, 0
      %p132 = por %p130, %p131
      %p133 = scmp.le.s32.totalorder 1, %s12
      %p134 = scmp.lt.s32.totalorder %s12, 5
      %p135 = pnand %p133, %p134
      %p136 = pneg %p135
      // Predicated region
      $region9: #{tpu_custom_call.1} parent=5 // pred_check
        _
      $region10: #{tpu_custom_call.1} parent=5 // pred_check_branch
        %138 = sbr.rel (%p135) target = $region12
      $region11: #{tpu_custom_call.1} parent=5 // pred_region
        %s139 = ssub.s32 %s12, 1
        // Predicated region
        $region13: #{tpu_custom_call.1} parent=11 // pred_check
          %p140 = pneg %p73
        $region14: #{tpu_custom_call.1} parent=11 // pred_check_branch
          %142 = sbr.rel (%p140) target = $region16
        $region15: #{tpu_custom_call.1} parent=11 // pred_region
          _
        $region16: #{tpu_custom_call.1} parent=11 // pred_fallthru
          _
      $region12: #{tpu_custom_call.1} parent=5 // pred_fallthru
        _
      %p143 = scmp.lt.s32.totalorder %s12, 4
      // Predicated region
      $region17: #{tpu_custom_call.1} parent=5 // pred_check
        %p144 = pneg %p143
      $region18: #{tpu_custom_call.1} parent=5 // pred_check_branch
        %146 = sbr.rel (%p144) target = $region20
      $region19: #{tpu_custom_call.1} parent=5 // pred_region
        // Predicated region
        $region21: #{tpu_custom_call.1} parent=19 // pred_check
          %p147 = pneg %p46
        $region22: #{tpu_custom_call.1} parent=19 // pred_check_branch
          %149 = sbr.rel (%p147) target = $region24
        $region23: #{tpu_custom_call.1} parent=19 // pred_region
          %s150 = smul.u32 4, %s20
          %p151 = scmp.lt.s32.totalorder %s19, 1
          %s152 = scalar_select %p151, %s19, 1
          %p153 = scmp.lt.s32.totalorder %s150, 7
          %s154 = scalar_select %p153, %s150, 7
          %s155 = smul.addr %s152, 8
          %s156 = sadd.s32 %s154, %s155
          %s157 = smul.addr %s156, 4
          %s158 = scalar_lea.vmem %s0, %s157
          %s159 = smul.u32 4, %s20
        $region24: #{tpu_custom_call.1} parent=19 // pred_fallthru
          _
        // Predicated region
        $region25: #{tpu_custom_call.1} parent=19 // pred_check
          %p160 = pneg %p93
        $region26: #{tpu_custom_call.1} parent=19 // pred_check_branch
          %162 = sbr.rel (%p160) target = $region28
        $region27: #{tpu_custom_call.1} parent=19 // pred_region
          %p163 = scmp.lt.s32.totalorder %s20, 1
          %s164 = scalar_select %p163, %s20, 1
          %s165 = smul.addr %s164, 2
          %s166 = smul.addr %s165, 4
          %s167 = scalar_lea.vmem %s2, %s166
        $region28: #{tpu_custom_call.1} parent=19 // pred_fallthru
          _
      $region20: #{tpu_custom_call.1} parent=5 // pred_fallthru
        _
      %p168 = scmp.le.s32.totalorder 1, %s12
      %p169 = scmp.lt.s32.totalorder %s12, 5
      %p170 = pnand %p168, %p169
      %p171 = pneg %p170
      // Predicated region
      $region29: #{tpu_custom_call.1} parent=5 // pred_check
        _
      $region30: #{tpu_custom_call.1} parent=5 // pred_check_branch
        %173 = sbr.rel (%p170) target = $region32
      $region31: #{tpu_custom_call.1} parent=5 // pred_region
        %s174 = ssub.s32 %s12, 1
        %s175 = smul.u32 4, %s22
        %p176 = scmp.lt.s32.totalorder %s21, 1
        %s177 = scalar_select %p176, %s21, 1
        %p178 = scmp.lt.s32.totalorder %s175, 7
        %s179 = scalar_select %p178, %s175, 7
        %s180 = smul.addr %s177, 8
        %s181 = sadd.s32 %s179, %s180
        %s182 = smul.addr %s181, 4
        %s183 = scalar_lea.vmem %s0, %s182
        %p184 = pneg %p52
        %p185 = pneg %p49
        %p186 = pneg %p73
        %p187 = pneg %p70
        %p188 = scmp.lt.s32.totalorder %s22, 1
        %s189 = scalar_select %p188, %s22, 1
        %s190 = smul.addr %s189, 2
        %s191 = smul.addr %s190, 4
        %s192 = scalar_lea.vmem %s2, %s191
        %p193 = pneg %p99
        %p194 = pneg %p96
        %p195 = pneg %p125
        %p196 = pneg %p122
        %s197 = sand.u32 %s112, 1
        %s198 = scalar_lea.sflag [#allocation3], %s197
        %s199 = sand.u32 %s112, 1
        %s200 = smul.addr %s199, 16
        %s201 = scalar_lea.vmem [#allocation2], %s200
        %s202 = smul.u32 4, %s22
        %p203 = scmp.lt.s32.totalorder %s21, 1
        %s204 = scalar_select %p203, %s21, 1
        %p205 = scmp.lt.s32.totalorder %s202, 7
        %s206 = scalar_select %p205, %s202, 7
        %s207 = smul.addr %s204, 8
        %s208 = sadd.s32 %s206, %s207
        %s209 = smul.addr %s208, 4
        %s210 = scalar_lea.vmem %s0, %s209
        %s211 = smul.u32 4, %s22
        %p212 = scmp.lt.s32.totalorder %s22, 1
        %s213 = scalar_select %p212, %s22, 1
        %s214 = smul.addr %s213, 2
        %s215 = smul.addr %s214, 4
        %s216 = scalar_lea.vmem %s2, %s215
        %p218 = scmp.eq.s32.totalorder %s22, 0
        // Predicated region
        $region33: #{tpu_custom_call.1} parent=31 // pred_check
          %p219 = pneg %p218
        $region34: #{tpu_custom_call.1} parent=31 // pred_check_branch
          %221 = sbr.rel (%p219) target = $region36
        $region35: #{tpu_custom_call.1} parent=31 // pred_region
          %222 = vst [vmem:[%s201] sm:$0xff] 0.0
          %223 = vst [vmem:[%s201 + $0x8] sm:$0xff] 0.0
        $region36: #{tpu_custom_call.1} parent=31 // pred_fallthru
          _
        %v224 = vld [vmem:[%s210] sm:$0xf]
        %v225 = vld [vmem:[%s210 + $0x4] sm:$0xf]
        %v226 = vld [vmem:[%s210 + $0x8] sm:$0xf]
        %v227 = vld [vmem:[%s210 + $0xc] sm:$0xf]
        %v228 = vld [vmem:[%s1] sm:$0xf]
        %v229 = vld [vmem:[%s1 + $0x4] sm:$0xf]
        %v230 = vld [vmem:[%s1 + $0x8] sm:$0xf]
        %v231 = vld [vmem:[%s1 + $0xc] sm:$0xf]
        %v236 = vunpack.c.l.b16 %v224
        %v237 = vunpack.c.l.b16 %v225
        %v238 = vunpack.c.l.b16 %v226
        %v239 = vunpack.c.l.b16 %v227
        %v240 = vpack.c.b16 %v237, %v236
        %v241 = vpack.c.b16 %v239, %v238
        %v246 = vunpack.c.l.b16 %v228
        %v247 = vunpack.c.l.b16 %v229
        %v248 = vunpack.c.l.b16 %v230
        %v249 = vunpack.c.l.b16 %v231
        %v250 = vpack.c.b16 %v247, %v246
        %v251 = vpack.c.b16 %v249, %v248
        %vm254 = vcmask 261120
        %v256 = vsel %vm254, %v240, 0
        %v259 = vsel %vm254, %v241, 0
        %261 = vmatprep.subr.bf16.mxu0 0
        %262 = vmatpush1.bf16.msra.mxu0 %v250
        %263 = vmatprep.subr.bf16.mxu0 0
        %264 = vmatpush1.bf16.msra.mxu0 %v251
        %265 = vmatprep.subr.bf16.mxu0 0
        %266 = vmatpush1.bf16.msra.mxu0 0
        %267 = vmatprep.subr.bf16.mxu0 0
        %268 = vmatpush1.bf16.msra.mxu0 0
        %269 = vmatprep.subr.bf16.mxu0 0
        %270 = vmatpush1.bf16.msra.mxu0 0
        %271 = vmatprep.subr.bf16.mxu0 0
        %272 = vmatpush1.bf16.msra.mxu0 0
        %273 = vmatprep.subr.bf16.mxu0 0
        %274 = vmatpush1.bf16.msra.mxu0 0
        %275 = vmatprep.subr.bf16.mxu0 0
        %276 = vmatpush1.bf16.msra.mxu0 0
        %277 = vmatprep.subr.bf16.mxu0 0
        %278 = vmatpush1.bf16.msra.mxu0 0
        %279 = vmatprep.subr.bf16.mxu0 0
        %280 = vmatpush1.bf16.msra.mxu0 0
        %281 = vmatprep.subr.bf16.mxu0 0
        %282 = vmatpush1.bf16.msra.mxu0 0
        %283 = vmatprep.subr.bf16.mxu0 0
        %284 = vmatpush1.bf16.msra.mxu0 0
        %285 = vmatprep.subr.bf16.mxu0 0
        %286 = vmatpush1.bf16.msra.mxu0 0
        %287 = vmatprep.subr.bf16.mxu0 0
        %288 = vmatpush1.bf16.msra.mxu0 0
        %289 = vmatprep.subr.bf16.mxu0 0
        %290 = vmatpush1.bf16.msra.mxu0 0
        %291 = vmatprep.subr.bf16.mxu0 0
        %292 = vmatpush1.bf16.msra.mxu0 0
        %293 = vmatprep.mubr.bf16.mxu0 0
        %294 = vmatmul.mubr.bf16.gmra.mrb[0].mxu0 %v256
        %v295 = vpop.f32.mrb[0].mxu0
        %v296 = vadd.f32 0.0, %v295
        %v297 = vpop.f32.mrb[0].mxu0
        %v298 = vpop.f32.mrb[0].mxu0
        %v299 = vadd.f32 0.0, %v298
        %v300 = vpop.f32.mrb[0].mxu0
        %301 = vmatprep.mubr.bf16.mxu0 0
        %302 = vmatmul.mubr.bf16.gmra.mrb[0].mxu0 %v259
        %v303 = vpop.f32.mrb[0].mxu0
        %v304 = vadd.f32 0.0, %v303
        %v305 = vpop.f32.mrb[0].mxu0
        %v306 = vpop.f32.mrb[0].mxu0
        %v307 = vadd.f32 0.0, %v306
        %v308 = vpop.f32.mrb[0].mxu0
        %309 = vdwg.mxu0
        %v310 = vmax.f32 %v296, 0.0
        %v311 = vmax.f32 %v299, 0.0
        %v312 = vmax.f32 %v304, 0.0
        %v313 = vmax.f32 %v307, 0.0
        %v314 = vpack.c.bf16 %v311, %v310
        %v315 = vpack.c.bf16 %v313, %v312
        %v316 = vld [vmem:[%s201] sm:$0xff]
        %v317 = vld [vmem:[%s201 + $0x8] sm:$0xff]
        %v318 = vld [vmem:[%s216] sm:$0xf]
        %v319 = vld [vmem:[%s216 + $0x4] sm:$0xf]
        %v322 = vunpack.c.l.b16 %v318
        %v323 = vunpack.c.l.b16 %v319
        %v324 = vpack.c.b16 %v323, %v322
        %v326 = vsel %vm254, %v324, 0
        %328 = vmatprep.subr.bf16.mxu0 0
        %329 = vmatpush1.bf16.msra.mxu0 %v314
        %330 = vmatprep.subr.bf16.mxu0 0
        %331 = vmatpush1.bf16.msra.mxu0 %v315
        %332 = vmatprep.subr.bf16.mxu0 0
        %333 = vmatpush1.bf16.msra.mxu0 0
        %334 = vmatprep.subr.bf16.mxu0 0
        %335 = vmatpush1.bf16.msra.mxu0 0
        %336 = vmatprep.subr.bf16.mxu0 0
        %337 = vmatpush1.bf16.msra.mxu0 0
        %338 = vmatprep.subr.bf16.mxu0 0
        %339 = vmatpush1.bf16.msra.mxu0 0
        %340 = vmatprep.subr.bf16.mxu0 0
        %341 = vmatpush1.bf16.msra.mxu0 0
        %342 = vmatprep.subr.bf16.mxu0 0
        %343 = vmatpush1.bf16.msra.mxu0 0
        %344 = vmatprep.subr.bf16.mxu0 0
        %345 = vmatpush1.bf16.msra.mxu0 0
        %346 = vmatprep.subr.bf16.mxu0 0
        %347 = vmatpush1.bf16.msra.mxu0 0
        %348 = vmatprep.subr.bf16.mxu0 0
        %349 = vmatpush1.bf16.msra.mxu0 0
        %350 = vmatprep.subr.bf16.mxu0 0
        %351 = vmatpush1.bf16.msra.mxu0 0
        %352 = vmatprep.subr.bf16.mxu0 0
        %353 = vmatpush1.bf16.msra.mxu0 0
        %354 = vmatprep.subr.bf16.mxu0 0
        %355 = vmatpush1.bf16.msra.mxu0 0
        %356 = vmatprep.subr.bf16.mxu0 0
        %357 = vmatpush1.bf16.msra.mxu0 0
        %358 = vmatprep.subr.bf16.mxu0 0
        %359 = vmatpush1.bf16.msra.mxu0 0
        %360 = vmatprep.mubr.bf16.mxu0 0
        %361 = vmatmul.mubr.bf16.gmra.mrb[0].mxu0 %v326
        %v362 = vpop.f32.mrb[0].mxu0
        %v363 = vadd.f32 0.0, %v362
        %v364 = vpop.f32.mrb[0].mxu0
        %v365 = vpop.f32.mrb[0].mxu0
        %v366 = vadd.f32 0.0, %v365
        %v367 = vpop.f32.mrb[0].mxu0
        %368 = vdwg.mxu0
        %v369 = vadd.f32 %v316, %v363
        %v370 = vadd.f32 %v317, %v366
        %371 = vst [vmem:[%s201] sm:$0xff] %v369
        %372 = vst [vmem:[%s201 + $0x8] sm:$0xff] %v370
        %s373 = sand.u32 %s112, 1
        %s374 = scalar_lea.sflag [#allocation3], %s373
        %s375 = sand.u32 %s112, 1
        %s376 = smul.addr %s375, 16
        %s377 = scalar_lea.vmem [#allocation2], %s376
        // Predicated region
        $region37: #{tpu_custom_call.1} parent=31 // pred_check
          %p378 = pneg %p122
        $region38: #{tpu_custom_call.1} parent=31 // pred_check_branch
          %380 = sbr.rel (%p378) target = $region40
        $region39: #{tpu_custom_call.1} parent=31 // pred_region
          %s382 = ssub.s32 256, 256
          %383 = vsyncadd %s374, %s382
          %s384 = smul.addr %s21, 2
          %s385 = smul.addr %s384, 128
          %s386 = scalar_lea.hbm %s3, %s385
          %s387 = sshll.u32 %s377, 4
          %s388 = int_to_ptr.vmem [resolvable:$true] %s387
          %393 = dma.vmem_to_hbm [thread:$0]  %s388, 256, %s386, %s374, 128, 128, 8
        $region40: #{tpu_custom_call.1} parent=31 // pred_fallthru
          _
      $region32: #{tpu_custom_call.1} parent=5 // pred_fallthru
        _
      %p394 = scmp.le.s32.totalorder 2, %s12
      // Predicated region
      $region41: #{tpu_custom_call.1} parent=5 // pred_check
        %p395 = pneg %p394
      $region42: #{tpu_custom_call.1} parent=5 // pred_check_branch
        %397 = sbr.rel (%p395) target = $region44
      $region43: #{tpu_custom_call.1} parent=5 // pred_region
        %s398 = ssub.s32 %s12, 2
        // Predicated region
        $region45: #{tpu_custom_call.1} parent=43 // pred_check
          %p399 = pneg %p128
        $region46: #{tpu_custom_call.1} parent=43 // pred_check_branch
          %401 = sbr.rel (%p399) target = $region48
        $region47: #{tpu_custom_call.1} parent=43 // pred_region
          %s402 = sand.u32 %s113, 1
          %s403 = scalar_lea.sflag [#allocation3], %s402
          %s404 = sand.u32 %s113, 1
          %s405 = smul.addr %s404, 16
          %s406 = scalar_lea.vmem [#allocation2], %s405
          %407 = dma.done %s403, 256
        $region48: #{tpu_custom_call.1} parent=43 // pred_fallthru
          _
      $region44: #{tpu_custom_call.1} parent=5 // pred_fallthru
        _
    $region6: #{tpu_custom_call.1} parent=1 // loop_footer
      %s16 = sadd.s32 1, %s12
    $region7: #{tpu_custom_call.1} parent=1 // loop_footer_branch
      %11 = sbr.rel target = $region3
    $region8: #{tpu_custom_call.1} parent=1 // loop_exit
      _
    %408 = vsyncpa [#allocation3], 1
    %s409 = scalar_lea.sflag [#allocation3], 1
    %410 = vsyncpa %s409, 1

</llo_original>
